<compile_context>
chip_gen: v6e
topology: v6e:2x2x1
jax: 0.10.0
libtpu: 0.0.40
codegen_flags: <defaults>
</compile_context>

<pallas_src>
import math
import functools

import jax
import jax.numpy as jnp
from jax.experimental import pallas as pl
from jax.experimental.pallas import tpu as pltpu


def _round_up(a: int, b: int) -> int:
    return -(-a // b) * b


def _nars_kernel(x_ref, kn_ref, w_ref, c_ref, s_ref, o_ref, *,
                 n_knots, chunk, expected_value):
    # x_ref:  [TB, L]   lane-packed batch tile (P batch elems per row, Fp lanes each)
    # kn_ref: [K, L]    knots (transposed + lane-tiled), VMEM resident
    # w_ref:  [K, L]    (lw+rw)/2 / sqrt(2K) (transposed + lane-tiled), resident
    # c_ref:  [2, L]    row0 = c0, row1 = c1 (scale folded in), resident
    # s_ref:  [L, 128]  0/1 selection matrix: sums each Fp-lane group into one column
    # o_ref:  [TB, 128] lane-dense output block (first P columns meaningful)
    n_chunks = x_ref.shape[0] // chunk

    def body(ci, carry):
        r0 = pl.multiple_of(ci * chunk, chunk)
        x = x_ref[pl.ds(r0, chunk), :]                        # [chunk, L]
        # Linear part of the |x-k| rewrite.
        acc = c_ref[0:1, :] - x * c_ref[1:2, :]               # [chunk, L]
        # Unrolled knot loop: sub, abs, mul, add per (element, knot) on the VPU.
        for k in range(n_knots):
            kn = kn_ref[k:k + 1, :]                           # [1, L] sublane-bcast
            w = w_ref[k:k + 1, :]                             # [1, L]
            acc = acc + w * jnp.abs(x - kn)
        # Feature reduction on the MXU (natural [M,K]x[K,N] orientation): each
        # Fp-lane feature group is summed into one per-batch-element column.
        row = jax.lax.dot_general(
            acc, s_ref[...],
            dimension_numbers=(((1,), (0,)), ((), ())),
            preferred_element_type=jnp.float32)               # [chunk, 128]
        o_ref[pl.ds(r0, chunk), :] = row + expected_value
        return carry

    jax.lax.fori_loop(0, n_chunks, body, 0)


def nars_forward(x, knots, left_weight, right_weight, expected_value, *,
                 block_rows=512):
    """x: [B, F] float32 in [0,1]; knots/left_weight/right_weight: [F, K].
    Returns preds: [B] float32 (NARS.forward)."""
    B, F = x.shape
    Fk, K = knots.shape
    assert Fk == F
    assert left_weight.shape == (F, K) and right_weight.shape == (F, K)

    x = x.astype(jnp.float32)
    knots = knots.astype(jnp.float32)
    lw = left_weight.astype(jnp.float32)
    rw = right_weight.astype(jnp.float32)

    inv_scale = 1.0 / math.sqrt(2.0 * K)

    # ---- lane-packing geometry -------------------------------------------
    if F <= 128:
        Fp = 1 << max(F - 1, 0).bit_length()   # next power of two (divides 128)
        P = 128 // Fp                          # batch elements packed per row
        L = 128
    else:
        Fp = _round_up(F, 128)
        P = 1
        L = Fp

    # ---- one-time O(F*K) precompute (scale folded in) ---------------------
    pad_f = ((0, Fp - F), (0, 0))
    knots_p = jnp.pad(knots, pad_f)
    lw_p = jnp.pad(lw, pad_f)
    rw_p = jnp.pad(rw, pad_f)

    w = 0.5 * (lw_p + rw_p) * inv_scale                      # [Fp, K]
    d = 0.5 * (lw_p - rw_p) * inv_scale                      # [Fp, K]
    c0 = jnp.sum(d * knots_p, axis=1)                        # [Fp]
    c1 = jnp.sum(d, axis=1)                                  # [Fp]

    kn_t = jnp.tile(knots_p.T, (1, P))                       # [K, L]
    w_t = jnp.tile(w.T, (1, P))                              # [K, L]
    consts = jnp.tile(jnp.stack([c0, c1], axis=0), (1, P))   # [2, L]

    # 0/1 selection matrix: column g sums the Fp lanes of packed batch slot g.
    lane_group = jnp.arange(L, dtype=jnp.int32) // Fp
    sel = (lane_group[:, None] == jnp.arange(128, dtype=jnp.int32)[None, :]
           ).astype(jnp.float32)                             # [L, 128]

    # ---- batch tiling ------------------------------------------------------
    rows = -(-B // P)                                        # packed rows needed
    tb = min(block_rows, _round_up(rows, 8))
    # Keep at least 2 grid steps so both v7x TensorCores get work (padding waste
    # for tiny batches is negligible).
    tb = min(tb, max(8, _round_up(-(-rows // 2), 8)))
    if tb > 128:
        tb = _round_up(tb, 64)
        chunk = 64                 # register-resident inner chunk
    else:
        chunk = tb
    num_tiles = max(2, -(-rows // tb))
    rows_pad = num_tiles * tb

    x_packed = jnp.pad(x, ((0, rows_pad * P - B), (0, Fp - F))).reshape(rows_pad, L)

    kernel = functools.partial(
        _nars_kernel, n_knots=K, chunk=chunk,
        expected_value=float(expected_value))

    cost = pl.CostEstimate(
        flops=int(rows_pad * L * (4 * K + 4) + 2 * rows_pad * L * 128),
        transcendentals=0,
        bytes_accessed=int(4 * (rows_pad * L + rows_pad * 128
                                + 2 * K * L + 2 * L + L * 128)))

    out = pl.pallas_call(
        kernel,
        out_shape=jax.ShapeDtypeStruct((rows_pad, 128), jnp.float32),
        grid_spec=pltpu.PrefetchScalarGridSpec(
            num_scalar_prefetch=0,
            grid=(num_tiles,),
            in_specs=[
                pl.BlockSpec((tb, L), lambda i: (i, 0)),     # x tile (pipelined)
                pl.BlockSpec((K, L), lambda i: (0, 0)),      # knots (resident)
                pl.BlockSpec((K, L), lambda i: (0, 0)),      # weights (resident)
                pl.BlockSpec((2, L), lambda i: (0, 0)),      # c0/c1 (resident)
                pl.BlockSpec((L, 128), lambda i: (0, 0)),    # selection (resident)
            ],
            out_specs=pl.BlockSpec((tb, 128), lambda i: (i, 0)),
        ),
        compiler_params=pltpu.CompilerParams(
            dimension_semantics=("parallel",)),
        cost_estimate=cost,
    )(x_packed, kn_t, w_t, consts, sel)

    # First P columns of each packed row are the per-batch-element sums.
    return out[:, :P].reshape(-1)[:B]


def nars_reference(x, knots, left_weight, right_weight, expected_value):
    """Pure-JAX reference mirroring the PyTorch module exactly (two-ReLU form)."""
    K = knots.shape[-1]
    scale = math.sqrt(2.0 * K)
    xc = x[:, :, None]
    xr = right_weight[None] * jax.nn.relu(xc - knots[None])
    xl = left_weight[None] * jax.nn.relu(knots[None] - xc)
    emb = jnp.sum(xl + xr, axis=-1) / scale
    return jnp.sum(emb, axis=-1) + expected_value


if __name__ == "__main__":
    # Small shapes consistent with the module: batch=8, input_size(n_features)=16,
    # n_knots=25 (the RegressionSpline default).
    B, F, K = 8, 16, 25
    kmin, kmax = 0.0, 1.0
    expected_value = 0.0

    key = jax.random.PRNGKey(0)
    kx, kl, kr = jax.random.split(key, 3)

    # Input in [0, 1], shape [batch, n_features]
    x = jax.random.uniform(kx, (B, F), dtype=jnp.float32)

    # Knots: linspace(kmin, kmax, K) repeated for each feature -> [F, K]
    knots = jnp.tile(jnp.linspace(kmin, kmax, K, dtype=jnp.float32)[None, :], (F, 1))

    # Deterministic xavier_normal_-style init for weights of shape (1, F, K):
    # fan_in = F*K, fan_out = 1*K  =>  std = sqrt(2 / (fan_in + fan_out))
    std = math.sqrt(2.0 / (F * K + K))
    left_weight = (std * jax.random.normal(kl, (F, K))).astype(jnp.float32)
    right_weight = (std * jax.random.normal(kr, (F, K))).astype(jnp.float32)

    preds = nars_forward(x, knots, left_weight, right_weight, expected_value)
    preds = jax.block_until_ready(preds)

    ref = nars_reference(x, knots, left_weight, right_weight, expected_value)
    assert preds.shape == (B,)
    assert jnp.allclose(preds, ref, atol=5e-5, rtol=5e-5), (preds, ref)

    print("KERNEL_OK")
</pallas_src>

<mosaic_0001>
module attributes {stable_mosaic.version = 11 : i64} {
  func.func @_nars_kernel(%arg0: i32, %arg1: memref<8x128xf32, #tpu.memory_space<vmem>>, %arg2: memref<25x128xf32, #tpu.memory_space<vmem>>, %arg3: memref<25x128xf32, #tpu.memory_space<vmem>>, %arg4: memref<2x128xf32, #tpu.memory_space<vmem>>, %arg5: memref<128x128xf32, #tpu.memory_space<vmem>>, %arg6: memref<8x128xf32, #tpu.memory_space<vmem>>) attributes {dimension_semantics = [#tpu.dimension_semantics<parallel>], iteration_bounds = array<i64: 2>, scalar_prefetch = 0 : i64, scratch_operands = 0 : i64, tpu.core_type = #tpu.core_type<tc>, window_params = [{transform_indices = @transform_0, window_bounds = array<i64: 8, 128>}, {pipeline_mode = #tpu.pipeline_mode<synchronous>, transform_indices = @transform_1, window_bounds = array<i64: 25, 128>}, {pipeline_mode = #tpu.pipeline_mode<synchronous>, transform_indices = @transform_2, window_bounds = array<i64: 25, 128>}, {pipeline_mode = #tpu.pipeline_mode<synchronous>, transform_indices = @transform_3, window_bounds = array<i64: 2, 128>}, {pipeline_mode = #tpu.pipeline_mode<synchronous>, transform_indices = @transform_4, window_bounds = array<i64: 128, 128>}, {transform_indices = @transform_5, window_bounds = array<i64: 8, 128>}]} {
    %c0_i32 = arith.constant 0 : i32
    %c8_i32 = arith.constant 8 : i32
    %0 = arith.muli %c0_i32, %c8_i32 : i32
    %1 = tpu.assume_multiple %0, 8 : i32
    %2 = arith.index_cast %1 : i32 to index
    %c0 = arith.constant 0 : index
    %3 = vector.load %arg1[%2, %c0] : memref<8x128xf32, #tpu.memory_space<vmem>>, vector<8x128xf32>
    %c0_0 = arith.constant 0 : index
    %c0_1 = arith.constant 0 : index
    %4 = vector.load %arg4[%c0_0, %c0_1] : memref<2x128xf32, #tpu.memory_space<vmem>>, vector<1x128xf32>
    %c1 = arith.constant 1 : index
    %c0_2 = arith.constant 0 : index
    %5 = vector.load %arg4[%c1, %c0_2] : memref<2x128xf32, #tpu.memory_space<vmem>>, vector<1x128xf32>
    %6 = vector.broadcast %5 : vector<1x128xf32> to vector<8x128xf32>
    %7 = arith.mulf %3, %6 : vector<8x128xf32>
    %8 = vector.broadcast %4 : vector<1x128xf32> to vector<8x128xf32>
    %9 = arith.subf %8, %7 : vector<8x128xf32>
    %c0_3 = arith.constant 0 : index
    %c0_4 = arith.constant 0 : index
    %10 = vector.load %arg2[%c0_3, %c0_4] : memref<25x128xf32, #tpu.memory_space<vmem>>, vector<1x128xf32>
    %c0_5 = arith.constant 0 : index
    %c0_6 = arith.constant 0 : index
    %11 = vector.load %arg3[%c0_5, %c0_6] : memref<25x128xf32, #tpu.memory_space<vmem>>, vector<1x128xf32>
    %12 = vector.broadcast %10 : vector<1x128xf32> to vector<8x128xf32>
    %13 = arith.subf %3, %12 : vector<8x128xf32>
    %14 = math.absf %13 : vector<8x128xf32>
    %15 = vector.broadcast %11 : vector<1x128xf32> to vector<8x128xf32>
    %16 = arith.mulf %15, %14 : vector<8x128xf32>
    %17 = arith.addf %9, %16 : vector<8x128xf32>
    %c1_7 = arith.constant 1 : index
    %c0_8 = arith.constant 0 : index
    %18 = vector.load %arg2[%c1_7, %c0_8] : memref<25x128xf32, #tpu.memory_space<vmem>>, vector<1x128xf32>
    %c1_9 = arith.constant 1 : index
    %c0_10 = arith.constant 0 : index
    %19 = vector.load %arg3[%c1_9, %c0_10] : memref<25x128xf32, #tpu.memory_space<vmem>>, vector<1x128xf32>
    %20 = vector.broadcast %18 : vector<1x128xf32> to vector<8x128xf32>
    %21 = arith.subf %3, %20 : vector<8x128xf32>
    %22 = math.absf %21 : vector<8x128xf32>
    %23 = vector.broadcast %19 : vector<1x128xf32> to vector<8x128xf32>
    %24 = arith.mulf %23, %22 : vector<8x128xf32>
    %25 = arith.addf %17, %24 : vector<8x128xf32>
    %c2 = arith.constant 2 : index
    %c0_11 = arith.constant 0 : index
    %26 = vector.load %arg2[%c2, %c0_11] : memref<25x128xf32, #tpu.memory_space<vmem>>, vector<1x128xf32>
    %c2_12 = arith.constant 2 : index
    %c0_13 = arith.constant 0 : index
    %27 = vector.load %arg3[%c2_12, %c0_13] : memref<25x128xf32, #tpu.memory_space<vmem>>, vector<1x128xf32>
    %28 = vector.broadcast %26 : vector<1x128xf32> to vector<8x128xf32>
    %29 = arith.subf %3, %28 : vector<8x128xf32>
    %30 = math.absf %29 : vector<8x128xf32>
    %31 = vector.broadcast %27 : vector<1x128xf32> to vector<8x128xf32>
    %32 = arith.mulf %31, %30 : vector<8x128xf32>
    %33 = arith.addf %25, %32 : vector<8x128xf32>
    %c3 = arith.constant 3 : index
    %c0_14 = arith.constant 0 : index
    %34 = vector.load %arg2[%c3, %c0_14] : memref<25x128xf32, #tpu.memory_space<vmem>>, vector<1x128xf32>
    %c3_15 = arith.constant 3 : index
    %c0_16 = arith.constant 0 : index
    %35 = vector.load %arg3[%c3_15, %c0_16] : memref<25x128xf32, #tpu.memory_space<vmem>>, vector<1x128xf32>
    %36 = vector.broadcast %34 : vector<1x128xf32> to vector<8x128xf32>
    %37 = arith.subf %3, %36 : vector<8x128xf32>
    %38 = math.absf %37 : vector<8x128xf32>
    %39 = vector.broadcast %35 : vector<1x128xf32> to vector<8x128xf32>
    %40 = arith.mulf %39, %38 : vector<8x128xf32>
    %41 = arith.addf %33, %40 : vector<8x128xf32>
    %c4 = arith.constant 4 : index
    %c0_17 = arith.constant 0 : index
    %42 = vector.load %arg2[%c4, %c0_17] : memref<25x128xf32, #tpu.memory_space<vmem>>, vector<1x128xf32>
    %c4_18 = arith.constant 4 : index
    %c0_19 = arith.constant 0 : index
    %43 = vector.load %arg3[%c4_18, %c0_19] : memref<25x128xf32, #tpu.memory_space<vmem>>, vector<1x128xf32>
    %44 = vector.broadcast %42 : vector<1x128xf32> to vector<8x128xf32>
    %45 = arith.subf %3, %44 : vector<8x128xf32>
    %46 = math.absf %45 : vector<8x128xf32>
    %47 = vector.broadcast %43 : vector<1x128xf32> to vector<8x128xf32>
    %48 = arith.mulf %47, %46 : vector<8x128xf32>
    %49 = arith.addf %41, %48 : vector<8x128xf32>
    %c5 = arith.constant 5 : index
    %c0_20 = arith.constant 0 : index
    %50 = vector.load %arg2[%c5, %c0_20] : memref<25x128xf32, #tpu.memory_space<vmem>>, vector<1x128xf32>
    %c5_21 = arith.constant 5 : index
    %c0_22 = arith.constant 0 : index
    %51 = vector.load %arg3[%c5_21, %c0_22] : memref<25x128xf32, #tpu.memory_space<vmem>>, vector<1x128xf32>
    %52 = vector.broadcast %50 : vector<1x128xf32> to vector<8x128xf32>
    %53 = arith.subf %3, %52 : vector<8x128xf32>
    %54 = math.absf %53 : vector<8x128xf32>
    %55 = vector.broadcast %51 : vector<1x128xf32> to vector<8x128xf32>
    %56 = arith.mulf %55, %54 : vector<8x128xf32>
    %57 = arith.addf %49, %56 : vector<8x128xf32>
    %c6 = arith.constant 6 : index
    %c0_23 = arith.constant 0 : index
    %58 = vector.load %arg2[%c6, %c0_23] : memref<25x128xf32, #tpu.memory_space<vmem>>, vector<1x128xf32>
    %c6_24 = arith.constant 6 : index
    %c0_25 = arith.constant 0 : index
    %59 = vector.load %arg3[%c6_24, %c0_25] : memref<25x128xf32, #tpu.memory_space<vmem>>, vector<1x128xf32>
    %60 = vector.broadcast %58 : vector<1x128xf32> to vector<8x128xf32>
    %61 = arith.subf %3, %60 : vector<8x128xf32>
    %62 = math.absf %61 : vector<8x128xf32>
    %63 = vector.broadcast %59 : vector<1x128xf32> to vector<8x128xf32>
    %64 = arith.mulf %63, %62 : vector<8x128xf32>
    %65 = arith.addf %57, %64 : vector<8x128xf32>
    %c7 = arith.constant 7 : index
    %c0_26 = arith.constant 0 : index
    %66 = vector.load %arg2[%c7, %c0_26] : memref<25x128xf32, #tpu.memory_space<vmem>>, vector<1x128xf32>
    %c7_27 = arith.constant 7 : index
    %c0_28 = arith.constant 0 : index
    %67 = vector.load %arg3[%c7_27, %c0_28] : memref<25x128xf32, #tpu.memory_space<vmem>>, vector<1x128xf32>
    %68 = vector.broadcast %66 : vector<1x128xf32> to vector<8x128xf32>
    %69 = arith.subf %3, %68 : vector<8x128xf32>
    %70 = math.absf %69 : vector<8x128xf32>
    %71 = vector.broadcast %67 : vector<1x128xf32> to vector<8x128xf32>
    %72 = arith.mulf %71, %70 : vector<8x128xf32>
    %73 = arith.addf %65, %72 : vector<8x128xf32>
    %c8 = arith.constant 8 : index
    %c0_29 = arith.constant 0 : index
    %74 = vector.load %arg2[%c8, %c0_29] : memref<25x128xf32, #tpu.memory_space<vmem>>, vector<1x128xf32>
    %c8_30 = arith.constant 8 : index
    %c0_31 = arith.constant 0 : index
    %75 = vector.load %arg3[%c8_30, %c0_31] : memref<25x128xf32, #tpu.memory_space<vmem>>, vector<1x128xf32>
    %76 = vector.broadcast %74 : vector<1x128xf32> to vector<8x128xf32>
    %77 = arith.subf %3, %76 : vector<8x128xf32>
    %78 = math.absf %77 : vector<8x128xf32>
    %79 = vector.broadcast %75 : vector<1x128xf32> to vector<8x128xf32>
    %80 = arith.mulf %79, %78 : vector<8x128xf32>
    %81 = arith.addf %73, %80 : vector<8x128xf32>
    %c9 = arith.constant 9 : index
    %c0_32 = arith.constant 0 : index
    %82 = vector.load %arg2[%c9, %c0_32] : memref<25x128xf32, #tpu.memory_space<vmem>>, vector<1x128xf32>
    %c9_33 = arith.constant 9 : index
    %c0_34 = arith.constant 0 : index
    %83 = vector.load %arg3[%c9_33, %c0_34] : memref<25x128xf32, #tpu.memory_space<vmem>>, vector<1x128xf32>
    %84 = vector.broadcast %82 : vector<1x128xf32> to vector<8x128xf32>
    %85 = arith.subf %3, %84 : vector<8x128xf32>
    %86 = math.absf %85 : vector<8x128xf32>
    %87 = vector.broadcast %83 : vector<1x128xf32> to vector<8x128xf32>
    %88 = arith.mulf %87, %86 : vector<8x128xf32>
    %89 = arith.addf %81, %88 : vector<8x128xf32>
    %c10 = arith.constant 10 : index
    %c0_35 = arith.constant 0 : index
    %90 = vector.load %arg2[%c10, %c0_35] : memref<25x128xf32, #tpu.memory_space<vmem>>, vector<1x128xf32>
    %c10_36 = arith.constant 10 : index
    %c0_37 = arith.constant 0 : index
    %91 = vector.load %arg3[%c10_36, %c0_37] : memref<25x128xf32, #tpu.memory_space<vmem>>, vector<1x128xf32>
    %92 = vector.broadcast %90 : vector<1x128xf32> to vector<8x128xf32>
    %93 = arith.subf %3, %92 : vector<8x128xf32>
    %94 = math.absf %93 : vector<8x128xf32>
    %95 = vector.broadcast %91 : vector<1x128xf32> to vector<8x128xf32>
    %96 = arith.mulf %95, %94 : vector<8x128xf32>
    %97 = arith.addf %89, %96 : vector<8x128xf32>
    %c11 = arith.constant 11 : index
    %c0_38 = arith.constant 0 : index
    %98 = vector.load %arg2[%c11, %c0_38] : memref<25x128xf32, #tpu.memory_space<vmem>>, vector<1x128xf32>
    %c11_39 = arith.constant 11 : index
    %c0_40 = arith.constant 0 : index
    %99 = vector.load %arg3[%c11_39, %c0_40] : memref<25x128xf32, #tpu.memory_space<vmem>>, vector<1x128xf32>
    %100 = vector.broadcast %98 : vector<1x128xf32> to vector<8x128xf32>
    %101 = arith.subf %3, %100 : vector<8x128xf32>
    %102 = math.absf %101 : vector<8x128xf32>
    %103 = vector.broadcast %99 : vector<1x128xf32> to vector<8x128xf32>
    %104 = arith.mulf %103, %102 : vector<8x128xf32>
    %105 = arith.addf %97, %104 : vector<8x128xf32>
    %c12 = arith.constant 12 : index
    %c0_41 = arith.constant 0 : index
    %106 = vector.load %arg2[%c12, %c0_41] : memref<25x128xf32, #tpu.memory_space<vmem>>, vector<1x128xf32>
    %c12_42 = arith.constant 12 : index
    %c0_43 = arith.constant 0 : index
    %107 = vector.load %arg3[%c12_42, %c0_43] : memref<25x128xf32, #tpu.memory_space<vmem>>, vector<1x128xf32>
    %108 = vector.broadcast %106 : vector<1x128xf32> to vector<8x128xf32>
    %109 = arith.subf %3, %108 : vector<8x128xf32>
    %110 = math.absf %109 : vector<8x128xf32>
    %111 = vector.broadcast %107 : vector<1x128xf32> to vector<8x128xf32>
    %112 = arith.mulf %111, %110 : vector<8x128xf32>
    %113 = arith.addf %105, %112 : vector<8x128xf32>
    %c13 = arith.constant 13 : index
    %c0_44 = arith.constant 0 : index
    %114 = vector.load %arg2[%c13, %c0_44] : memref<25x128xf32, #tpu.memory_space<vmem>>, vector<1x128xf32>
    %c13_45 = arith.constant 13 : index
    %c0_46 = arith.constant 0 : index
    %115 = vector.load %arg3[%c13_45, %c0_46] : memref<25x128xf32, #tpu.memory_space<vmem>>, vector<1x128xf32>
    %116 = vector.broadcast %114 : vector<1x128xf32> to vector<8x128xf32>
    %117 = arith.subf %3, %116 : vector<8x128xf32>
    %118 = math.absf %117 : vector<8x128xf32>
    %119 = vector.broadcast %115 : vector<1x128xf32> to vector<8x128xf32>
    %120 = arith.mulf %119, %118 : vector<8x128xf32>
    %121 = arith.addf %113, %120 : vector<8x128xf32>
    %c14 = arith.constant 14 : index
    %c0_47 = arith.constant 0 : index
    %122 = vector.load %arg2[%c14, %c0_47] : memref<25x128xf32, #tpu.memory_space<vmem>>, vector<1x128xf32>
    %c14_48 = arith.constant 14 : index
    %c0_49 = arith.constant 0 : index
    %123 = vector.load %arg3[%c14_48, %c0_49] : memref<25x128xf32, #tpu.memory_space<vmem>>, vector<1x128xf32>
    %124 = vector.broadcast %122 : vector<1x128xf32> to vector<8x128xf32>
    %125 = arith.subf %3, %124 : vector<8x128xf32>
    %126 = math.absf %125 : vector<8x128xf32>
    %127 = vector.broadcast %123 : vector<1x128xf32> to vector<8x128xf32>
    %128 = arith.mulf %127, %126 : vector<8x128xf32>
    %129 = arith.addf %121, %128 : vector<8x128xf32>
    %c15 = arith.constant 15 : index
    %c0_50 = arith.constant 0 : index
    %130 = vector.load %arg2[%c15, %c0_50] : memref<25x128xf32, #tpu.memory_space<vmem>>, vector<1x128xf32>
    %c15_51 = arith.constant 15 : index
    %c0_52 = arith.constant 0 : index
    %131 = vector.load %arg3[%c15_51, %c0_52] : memref<25x128xf32, #tpu.memory_space<vmem>>, vector<1x128xf32>
    %132 = vector.broadcast %130 : vector<1x128xf32> to vector<8x128xf32>
    %133 = arith.subf %3, %132 : vector<8x128xf32>
    %134 = math.absf %133 : vector<8x128xf32>
    %135 = vector.broadcast %131 : vector<1x128xf32> to vector<8x128xf32>
    %136 = arith.mulf %135, %134 : vector<8x128xf32>
    %137 = arith.addf %129, %136 : vector<8x128xf32>
    %c16 = arith.constant 16 : index
    %c0_53 = arith.constant 0 : index
    %138 = vector.load %arg2[%c16, %c0_53] : memref<25x128xf32, #tpu.memory_space<vmem>>, vector<1x128xf32>
    %c16_54 = arith.constant 16 : index
    %c0_55 = arith.constant 0 : index
    %139 = vector.load %arg3[%c16_54, %c0_55] : memref<25x128xf32, #tpu.memory_space<vmem>>, vector<1x128xf32>
    %140 = vector.broadcast %138 : vector<1x128xf32> to vector<8x128xf32>
    %141 = arith.subf %3, %140 : vector<8x128xf32>
    %142 = math.absf %141 : vector<8x128xf32>
    %143 = vector.broadcast %139 : vector<1x128xf32> to vector<8x128xf32>
    %144 = arith.mulf %143, %142 : vector<8x128xf32>
    %145 = arith.addf %137, %144 : vector<8x128xf32>
    %c17 = arith.constant 17 : index
    %c0_56 = arith.constant 0 : index
    %146 = vector.load %arg2[%c17, %c0_56] : memref<25x128xf32, #tpu.memory_space<vmem>>, vector<1x128xf32>
    %c17_57 = arith.constant 17 : index
    %c0_58 = arith.constant 0 : index
    %147 = vector.load %arg3[%c17_57, %c0_58] : memref<25x128xf32, #tpu.memory_space<vmem>>, vector<1x128xf32>
    %148 = vector.broadcast %146 : vector<1x128xf32> to vector<8x128xf32>
    %149 = arith.subf %3, %148 : vector<8x128xf32>
    %150 = math.absf %149 : vector<8x128xf32>
    %151 = vector.broadcast %147 : vector<1x128xf32> to vector<8x128xf32>
    %152 = arith.mulf %151, %150 : vector<8x128xf32>
    %153 = arith.addf %145, %152 : vector<8x128xf32>
    %c18 = arith.constant 18 : index
    %c0_59 = arith.constant 0 : index
    %154 = vector.load %arg2[%c18, %c0_59] : memref<25x128xf32, #tpu.memory_space<vmem>>, vector<1x128xf32>
    %c18_60 = arith.constant 18 : index
    %c0_61 = arith.constant 0 : index
    %155 = vector.load %arg3[%c18_60, %c0_61] : memref<25x128xf32, #tpu.memory_space<vmem>>, vector<1x128xf32>
    %156 = vector.broadcast %154 : vector<1x128xf32> to vector<8x128xf32>
    %157 = arith.subf %3, %156 : vector<8x128xf32>
    %158 = math.absf %157 : vector<8x128xf32>
    %159 = vector.broadcast %155 : vector<1x128xf32> to vector<8x128xf32>
    %160 = arith.mulf %159, %158 : vector<8x128xf32>
    %161 = arith.addf %153, %160 : vector<8x128xf32>
    %c19 = arith.constant 19 : index
    %c0_62 = arith.constant 0 : index
    %162 = vector.load %arg2[%c19, %c0_62] : memref<25x128xf32, #tpu.memory_space<vmem>>, vector<1x128xf32>
    %c19_63 = arith.constant 19 : index
    %c0_64 = arith.constant 0 : index
    %163 = vector.load %arg3[%c19_63, %c0_64] : memref<25x128xf32, #tpu.memory_space<vmem>>, vector<1x128xf32>
    %164 = vector.broadcast %162 : vector<1x128xf32> to vector<8x128xf32>
    %165 = arith.subf %3, %164 : vector<8x128xf32>
    %166 = math.absf %165 : vector<8x128xf32>
    %167 = vector.broadcast %163 : vector<1x128xf32> to vector<8x128xf32>
    %168 = arith.mulf %167, %166 : vector<8x128xf32>
    %169 = arith.addf %161, %168 : vector<8x128xf32>
    %c20 = arith.constant 20 : index
    %c0_65 = arith.constant 0 : index
    %170 = vector.load %arg2[%c20, %c0_65] : memref<25x128xf32, #tpu.memory_space<vmem>>, vector<1x128xf32>
    %c20_66 = arith.constant 20 : index
    %c0_67 = arith.constant 0 : index
    %171 = vector.load %arg3[%c20_66, %c0_67] : memref<25x128xf32, #tpu.memory_space<vmem>>, vector<1x128xf32>
    %172 = vector.broadcast %170 : vector<1x128xf32> to vector<8x128xf32>
    %173 = arith.subf %3, %172 : vector<8x128xf32>
    %174 = math.absf %173 : vector<8x128xf32>
    %175 = vector.broadcast %171 : vector<1x128xf32> to vector<8x128xf32>
    %176 = arith.mulf %175, %174 : vector<8x128xf32>
    %177 = arith.addf %169, %176 : vector<8x128xf32>
    %c21 = arith.constant 21 : index
    %c0_68 = arith.constant 0 : index
    %178 = vector.load %arg2[%c21, %c0_68] : memref<25x128xf32, #tpu.memory_space<vmem>>, vector<1x128xf32>
    %c21_69 = arith.constant 21 : index
    %c0_70 = arith.constant 0 : index
    %179 = vector.load %arg3[%c21_69, %c0_70] : memref<25x128xf32, #tpu.memory_space<vmem>>, vector<1x128xf32>
    %180 = vector.broadcast %178 : vector<1x128xf32> to vector<8x128xf32>
    %181 = arith.subf %3, %180 : vector<8x128xf32>
    %182 = math.absf %181 : vector<8x128xf32>
    %183 = vector.broadcast %179 : vector<1x128xf32> to vector<8x128xf32>
    %184 = arith.mulf %183, %182 : vector<8x128xf32>
    %185 = arith.addf %177, %184 : vector<8x128xf32>
    %c22 = arith.constant 22 : index
    %c0_71 = arith.constant 0 : index
    %186 = vector.load %arg2[%c22, %c0_71] : memref<25x128xf32, #tpu.memory_space<vmem>>, vector<1x128xf32>
    %c22_72 = arith.constant 22 : index
    %c0_73 = arith.constant 0 : index
    %187 = vector.load %arg3[%c22_72, %c0_73] : memref<25x128xf32, #tpu.memory_space<vmem>>, vector<1x128xf32>
    %188 = vector.broadcast %186 : vector<1x128xf32> to vector<8x128xf32>
    %189 = arith.subf %3, %188 : vector<8x128xf32>
    %190 = math.absf %189 : vector<8x128xf32>
    %191 = vector.broadcast %187 : vector<1x128xf32> to vector<8x128xf32>
    %192 = arith.mulf %191, %190 : vector<8x128xf32>
    %193 = arith.addf %185, %192 : vector<8x128xf32>
    %c23 = arith.constant 23 : index
    %c0_74 = arith.constant 0 : index
    %194 = vector.load %arg2[%c23, %c0_74] : memref<25x128xf32, #tpu.memory_space<vmem>>, vector<1x128xf32>
    %c23_75 = arith.constant 23 : index
    %c0_76 = arith.constant 0 : index
    %195 = vector.load %arg3[%c23_75, %c0_76] : memref<25x128xf32, #tpu.memory_space<vmem>>, vector<1x128xf32>
    %196 = vector.broadcast %194 : vector<1x128xf32> to vector<8x128xf32>
    %197 = arith.subf %3, %196 : vector<8x128xf32>
    %198 = math.absf %197 : vector<8x128xf32>
    %199 = vector.broadcast %195 : vector<1x128xf32> to vector<8x128xf32>
    %200 = arith.mulf %199, %198 : vector<8x128xf32>
    %201 = arith.addf %193, %200 : vector<8x128xf32>
    %c24 = arith.constant 24 : index
    %c0_77 = arith.constant 0 : index
    %202 = vector.load %arg2[%c24, %c0_77] : memref<25x128xf32, #tpu.memory_space<vmem>>, vector<1x128xf32>
    %c24_78 = arith.constant 24 : index
    %c0_79 = arith.constant 0 : index
    %203 = vector.load %arg3[%c24_78, %c0_79] : memref<25x128xf32, #tpu.memory_space<vmem>>, vector<1x128xf32>
    %204 = vector.broadcast %202 : vector<1x128xf32> to vector<8x128xf32>
    %205 = arith.subf %3, %204 : vector<8x128xf32>
    %206 = math.absf %205 : vector<8x128xf32>
    %207 = vector.broadcast %203 : vector<1x128xf32> to vector<8x128xf32>
    %208 = arith.mulf %207, %206 : vector<8x128xf32>
    %209 = arith.addf %201, %208 : vector<8x128xf32>
    %c0_80 = arith.constant 0 : index
    %c0_81 = arith.constant 0 : index
    %210 = vector.load %arg5[%c0_80, %c0_81] : memref<128x128xf32, #tpu.memory_space<vmem>>, vector<128x128xf32>
    %cst = arith.constant dense<0.000000e+00> : vector<8x128xf32>
    %211 = tpu.matmul %209, %210, %cst {dimension_numbers = #tpu.dot_dimension_numbers<[1], [0], [0], [1], [0, 0, 1, 1], [], []>} : vector<8x128xf32>, vector<128x128xf32>, vector<8x128xf32> -> vector<8x128xf32>
    %cst_82 = arith.constant 0.000000e+00 : f32
    %212 = vector.broadcast %cst_82 : f32 to vector<8x128xf32>
    %213 = arith.addf %211, %212 : vector<8x128xf32>
    %214 = arith.index_cast %1 : i32 to index
    %c0_83 = arith.constant 0 : index
    %215 = vector.load %arg6[%214, %c0_83] : memref<8x128xf32, #tpu.memory_space<vmem>>, vector<8x128xf32>
    tpu.vector_store %arg6[%214, %c0_83], %213 {strides = array<i32>} : memref<8x128xf32, #tpu.memory_space<vmem>>, vector<8x128xf32>,
    %c1_i32 = arith.constant 1 : i32
    return
  }
  func.func @transform_0(%arg0: i32) -> (i32, i32) {
    %c0_i32 = arith.constant 0 : i32
    %c0_i32_0 = arith.constant 0 : i32
    return %arg0, %c0_i32 : i32, i32
  }
  func.func @transform_1(%arg0: i32) -> (i32, i32) {
    %c0_i32 = arith.constant 0 : i32
    %c0_i32_0 = arith.constant 0 : i32
    %c0_i32_1 = arith.constant 0 : i32
    return %c0_i32, %c0_i32_0 : i32, i32
  }
  func.func @transform_2(%arg0: i32) -> (i32, i32) {
    %c0_i32 = arith.constant 0 : i32
    %c0_i32_0 = arith.constant 0 : i32
    %c0_i32_1 = arith.constant 0 : i32
    return %c0_i32, %c0_i32_0 : i32, i32
  }
  func.func @transform_3(%arg0: i32) -> (i32, i32) {
    %c0_i32 = arith.constant 0 : i32
    %c0_i32_0 = arith.constant 0 : i32
    %c0_i32_1 = arith.constant 0 : i32
    return %c0_i32, %c0_i32_0 : i32, i32
  }
  func.func @transform_4(%arg0: i32) -> (i32, i32) {
    %c0_i32 = arith.constant 0 : i32
    %c0_i32_0 = arith.constant 0 : i32
    %c0_i32_1 = arith.constant 0 : i32
    return %c0_i32, %c0_i32_0 : i32, i32
  }
  func.func @transform_5(%arg0: i32) -> (i32, i32) {
    %c0_i32 = arith.constant 0 : i32
    %c0_i32_0 = arith.constant 0 : i32
    return %arg0, %c0_i32 : i32, i32
  }
}

</mosaic_0001>

<llo_original>
// kernel: tpu_custom_call.1
$region0: #{tpu_custom_call.1}
  #allocation0 [shape = 'u32[]', space=smem, size = 0x4, offset = 0x4, fixed_abs, tag = 'smem constant byte address 0x4 - core index']
  #allocation1 [shape = 'u32[144,128]{1,0:T(1,128)}', space=vmem, size = 0x12000, scoped, tag = 'internal scratch']
  %s0 = inlined_call_operand.hbm [shape: f32[16,128], index: 0, kind: input, shape index: {}]
  %s1 = inlined_call_operand.hbm [shape: f32[25,128], index: 1, kind: input, shape index: {}]
  %s2 = inlined_call_operand.hbm [shape: f32[25,128], index: 2, kind: input, shape index: {}]
  %s3 = inlined_call_operand.vmem [shape: f32[2,128], index: 3, kind: input, shape index: {}]
  %s4 = inlined_call_operand.hbm [shape: f32[128,128], index: 4, kind: input, shape index: {}]
  %s5 = inlined_call_operand.hbm [shape: f32[16,128], index: 5, kind: output, shape index: {}]
  %s6 = sld [smem:[#allocation0]]
  $region69: #{tpu_custom_call.1} parent=0
    _
  %s8 = ssub.s32 1, %s6
  %s9 = scalar_select 0, %s8, %s6
  $region1: #{tpu_custom_call.1} parent=0
    #allocation2 [shape = 'u8[8192]{0}', space=vmem, size = 0x2000, scoped, tag = 'input window, operand 0']
    #allocation3 [shape = 's32[2]{0}', space=sflag, size = 0x8, scoped, tag = 'scoped memory for tpu_custom_call.1']
    #allocation4 [shape = 's32[2]{0}', space=sflag, size = 0x8, scoped, tag = 'scoped memory for tpu_custom_call.1']
    #allocation5 [shape = 'u8[16384]{0}', space=vmem, size = 0x4000, scoped, tag = 'input window, operand 1, single buffered']
    #allocation6 [shape = 's32[1]{0}', space=sflag, size = 0x4, scoped, tag = 'scoped memory for tpu_custom_call.1']
    #allocation7 [shape = 'u8[16384]{0}', space=vmem, size = 0x4000, scoped, tag = 'input window, operand 2, single buffered']
    #allocation8 [shape = 'u8[65536]{0}', space=vmem, size = 0x10000, scoped, tag = 'input window, operand 4, single buffered']
    #allocation9 [shape = 's32[1]{0}', space=sflag, size = 0x4, scoped, tag = 'scoped memory for tpu_custom_call.1']
    #allocation10 [shape = 'u8[8192]{0}', space=vmem, size = 0x2000, scoped, tag = 'output window, operand 0']
    %10 = vsyncpa [#allocation3], 0
    %s11 = scalar_lea.sflag [#allocation3], 1
    %12 = vsyncpa %s11, 0
    %13 = vsyncpa [#allocation6], 0
    %14 = vsyncpa [#allocation9], 0
    %15 = vsyncpa [#allocation4], 0
    %s16 = scalar_lea.sflag [#allocation4], 1
    %17 = vsyncpa %s16, 0
    loop: start=0, step=1, limit=4
    $region2: #{tpu_custom_call.1} parent=1 // loop_pre_header
      _
    $region3: #{tpu_custom_call.1} parent=1 // loop_header
      %s19 = sphi 0, %s23
      %p20 = scmp.ge.s32.totalorder %s19, 4
      %s29 = sphi 0, %s31
      %s32 = sphi 0, %s29
      %s33 = sphi 0, %s32
      %s49 = sphi 0, %s33
      %s53 = sphi 0, %s53
      %s55 = sphi 0, %s53
      %s56 = sphi 0, %s55
      %s70 = sphi 0, %s56
      %s74 = sphi 0, %s74
      %s76 = sphi 0, %s74
      %s77 = sphi 0, %s76
      %s91 = sphi 0, %s77
      %s95 = sphi 0, %s95
      %s97 = sphi 0, %s95
      %s98 = sphi 0, %s97
      %s112 = sphi 0, %s98
      %s116 = sphi 0, %s116
      %s118 = sphi 0, %s116
      %s119 = sphi 0, %s118
      %s133 = sphi 0, %s119
      %s139 = sphi 0, %s141
      %s142 = sphi 0, %s139
      %s143 = sphi 0, %s142
      %s159 = sphi 0, %s143
    $region4: #{tpu_custom_call.1} parent=1 // loop_header_branch
      %22 = sbr.rel (%p20) target = $region8
    $region5: #{tpu_custom_call.1} parent=1 // loop_body
      %s24 = ssub.s32 %s19, 1
      %s25 = ssub.s32 %s19, 2
      %s26 = sadd.s32 %s19, 1
      %s27 = ssub.s32 %s19, %s26
      %p28 = scmp.eq.s32.totalorder %s27, 0
      %s30 = sadd.s32 %s29, 1
      %s31 = scalar_select %p28, %s29, %s30
      %p34 = pneg %p28
      %p35 = scmp.eq.s32.totalorder %s19, 1
      %p36 = por %p34, %p35
      %p37 = scmp.ne.s32.totalorder %s29, %s32
      %p38 = scmp.eq.s32.totalorder %s19, 0
      %p39 = por %p37, %p38
      %p40 = scmp.ne.s32.totalorder %s29, %s32
      %p41 = scmp.eq.s32.totalorder %s24, 1
      %p42 = por %p40, %p41
      %p43 = scmp.ne.s32.totalorder %s32, %s33
      %p44 = scmp.eq.s32.totalorder %s24, 0
      %p45 = por %p43, %p44
      %p46 = scmp.ne.s32.totalorder %s32, %s33
      %p47 = scmp.eq.s32.totalorder %s25, 1
      %p48 = por %p46, %p47
      %p50 = scmp.ne.s32.totalorder %s33, %s49
      %p51 = scmp.eq.s32.totalorder %s25, 0
      %p52 = por %p50, %p51
      %s54 = sadd.s32 %s53, 1
      %p57 = scmp.eq.s32.totalorder %s19, 1
      %p58 = scmp.ne.s32.totalorder %s53, %s55
      %p59 = scmp.eq.s32.totalorder %s19, 0
      %p60 = por %p58, %p59
      %p61 = scmp.ne.s32.totalorder %s53, %s55
      %p62 = scmp.eq.s32.totalorder %s24, 1
      %p63 = por %p61, %p62
      %p64 = scmp.ne.s32.totalorder %s55, %s56
      %p65 = scmp.eq.s32.totalorder %s24, 0
      %p66 = por %p64, %p65
      %p67 = scmp.ne.s32.totalorder %s55, %s56
      %p68 = scmp.eq.s32.totalorder %s25, 1
      %p69 = por %p67, %p68
      %p71 = scmp.ne.s32.totalorder %s56, %s70
      %p72 = scmp.eq.s32.totalorder %s25, 0
      %p73 = por %p71, %p72
      %s75 = sadd.s32 %s74, 1
      %p78 = scmp.eq.s32.totalorder %s19, 1
      %p79 = scmp.ne.s32.totalorder %s74, %s76
      %p80 = scmp.eq.s32.totalorder %s19, 0
      %p81 = por %p79, %p80
      %p82 = scmp.ne.s32.totalorder %s74, %s76
      %p83 = scmp.eq.s32.totalorder %s24, 1
      %p84 = por %p82, %p83
      %p85 = scmp.ne.s32.totalorder %s76, %s77
      %p86 = scmp.eq.s32.totalorder %s24, 0
      %p87 = por %p85, %p86
      %p88 = scmp.ne.s32.totalorder %s76, %s77
      %p89 = scmp.eq.s32.totalorder %s25, 1
      %p90 = por %p88, %p89
      %p92 = scmp.ne.s32.totalorder %s77, %s91
      %p93 = scmp.eq.s32.totalorder %s25, 0
      %p94 = por %p92, %p93
      %s96 = sadd.s32 %s95, 1
      %p99 = scmp.eq.s32.totalorder %s19, 1
      %p100 = scmp.ne.s32.totalorder %s95, %s97
      %p101 = scmp.eq.s32.totalorder %s19, 0
      %p102 = por %p100, %p101
      %p103 = scmp.ne.s32.totalorder %s95, %s97
      %p104 = scmp.eq.s32.totalorder %s24, 1
      %p105 = por %p103, %p104
      %p106 = scmp.ne.s32.totalorder %s97, %s98
      %p107 = scmp.eq.s32.totalorder %s24, 0
      %p108 = por %p106, %p107
      %p109 = scmp.ne.s32.totalorder %s97, %s98
      %p110 = scmp.eq.s32.totalorder %s25, 1
      %p111 = por %p109, %p110
      %p113 = scmp.ne.s32.totalorder %s98, %s112
      %p114 = scmp.eq.s32.totalorder %s25, 0
      %p115 = por %p113, %p114
      %s117 = sadd.s32 %s116, 1
      %p120 = scmp.eq.s32.totalorder %s19, 1
      %p121 = scmp.ne.s32.totalorder %s116, %s118
      %p122 = scmp.eq.s32.totalorder %s19, 0
      %p123 = por %p121, %p122
      %p124 = scmp.ne.s32.totalorder %s116, %s118
      %p125 = scmp.eq.s32.totalorder %s24, 1
      %p126 = por %p124, %p125
      %p127 = scmp.ne.s32.totalorder %s118, %s119
      %p128 = scmp.eq.s32.totalorder %s24, 0
      %p129 = por %p127, %p128
      %p130 = scmp.ne.s32.totalorder %s118, %s119
      %p131 = scmp.eq.s32.totalorder %s25, 1
      %p132 = por %p130, %p131
      %p134 = scmp.ne.s32.totalorder %s119, %s133
      %p135 = scmp.eq.s32.totalorder %s25, 0
      %p136 = por %p134, %p135
      %s137 = ssub.s32 %s19, %s26
      %p138 = scmp.eq.s32.totalorder %s137, 0
      %s140 = sadd.s32 %s139, 1
      %s141 = scalar_select %p138, %s139, %s140
      %p144 = pneg %p138
      %p145 = scmp.eq.s32.totalorder %s19, 1
      %p146 = por %p144, %p145
      %p147 = scmp.ne.s32.totalorder %s139, %s142
      %p148 = scmp.eq.s32.totalorder %s19, 0
      %p149 = por %p147, %p148
      %p150 = scmp.ne.s32.totalorder %s139, %s142
      %p151 = scmp.eq.s32.totalorder %s24, 1
      %p152 = por %p150, %p151
      %p153 = scmp.ne.s32.totalorder %s142, %s143
      %p154 = scmp.eq.s32.totalorder %s24, 0
      %p155 = por %p153, %p154
      %p156 = scmp.ne.s32.totalorder %s142, %s143
      %p157 = scmp.eq.s32.totalorder %s25, 1
      %p158 = por %p156, %p157
      %p160 = scmp.ne.s32.totalorder %s143, %s159
      %p161 = scmp.eq.s32.totalorder %s25, 0
      %p162 = por %p160, %p161
      %p163 = scmp.le.s32.totalorder 1, %s19
      %p164 = scmp.lt.s32.totalorder %s19, 3
      %p165 = pnand %p163, %p164
      %p166 = pneg %p165
      // Predicated region
      $region9: #{tpu_custom_call.1} parent=5 // pred_check
        _
      $region10: #{tpu_custom_call.1} parent=5 // pred_check_branch
        %168 = sbr.rel (%p165) target = $region12
      $region11: #{tpu_custom_call.1} parent=5 // pred_region
        %s169 = ssub.s32 %s19, 1
        // Predicated region
        $region13: #{tpu_custom_call.1} parent=11 // pred_check
          %p170 = pneg %p66
        $region14: #{tpu_custom_call.1} parent=11 // pred_check_branch
          %172 = sbr.rel (%p170) target = $region16
        $region15: #{tpu_custom_call.1} parent=11 // pred_region
          %s174 = ssub.s32 512, 512
          %175 = vsyncadd [#allocation6], %s174
          %s176 = sshll.u32 [#allocation5], 4
          %s177 = int_to_ptr.vmem [resolvable:$true] %s176
          %182 = dma.hbm_to_vmem [thread:$0]  %s1, 512, %s177, [#allocation6], 128, 128, 8
        $region16: #{tpu_custom_call.1} parent=11 // pred_fallthru
          _
        // Predicated region
        $region17: #{tpu_custom_call.1} parent=11 // pred_check
          %p183 = pneg %p87
        $region18: #{tpu_custom_call.1} parent=11 // pred_check_branch
          %185 = sbr.rel (%p183) target = $region20
        $region19: #{tpu_custom_call.1} parent=11 // pred_region
          %s187 = ssub.s32 512, 512
          %188 = vsyncadd [#allocation6], %s187
          %s189 = sshll.u32 [#allocation7], 4
          %s190 = int_to_ptr.vmem [resolvable:$true] %s189
          %195 = dma.hbm_to_vmem [thread:$0]  %s2, 512, %s190, [#allocation6], 128, 128, 8
        $region20: #{tpu_custom_call.1} parent=11 // pred_fallthru
          _
        // Predicated region
        $region21: #{tpu_custom_call.1} parent=11 // pred_check
          %p196 = pneg %p108
        $region22: #{tpu_custom_call.1} parent=11 // pred_check_branch
          %198 = sbr.rel (%p196) target = $region24
        $region23: #{tpu_custom_call.1} parent=11 // pred_region
          _
        $region24: #{tpu_custom_call.1} parent=11 // pred_fallthru
          _
        // Predicated region
        $region25: #{tpu_custom_call.1} parent=11 // pred_check
          %p199 = pneg %p129
        $region26: #{tpu_custom_call.1} parent=11 // pred_check_branch
          %201 = sbr.rel (%p199) target = $region28
        $region27: #{tpu_custom_call.1} parent=11 // pred_region
          %s203 = ssub.s32 2048, 2048
          %204 = vsyncadd [#allocation9], %s203
          %s205 = sshll.u32 [#allocation8], 4
          %s206 = int_to_ptr.vmem [resolvable:$true] %s205
          %211 = dma.hbm_to_vmem [thread:$0]  %s4, 2048, %s206, [#allocation9], 128, 128, 8
        $region28: #{tpu_custom_call.1} parent=11 // pred_fallthru
          _
      $region12: #{tpu_custom_call.1} parent=5 // pred_fallthru
        _
      %p212 = scmp.lt.s32.totalorder %s19, 2
      // Predicated region
      $region29: #{tpu_custom_call.1} parent=5 // pred_check
        %p213 = pneg %p212
      $region30: #{tpu_custom_call.1} parent=5 // pred_check_branch
        %215 = sbr.rel (%p213) target = $region32
      $region31: #{tpu_custom_call.1} parent=5 // pred_region
        // Predicated region
        $region33: #{tpu_custom_call.1} parent=31 // pred_check
          %p216 = pneg %p39
        $region34: #{tpu_custom_call.1} parent=31 // pred_check_branch
          %218 = sbr.rel (%p216) target = $region36
        $region35: #{tpu_custom_call.1} parent=31 // pred_region
          %s219 = sand.u32 %s29, 1
          %s220 = scalar_lea.sflag [#allocation3], %s219
          %s221 = sand.u32 %s29, 1
          %s222 = smul.addr %s221, 8
          %s223 = scalar_lea.vmem [#allocation2], %s222
          %s225 = ssub.s32 128, 128
          %226 = vsyncadd %s220, %s225
          %s227 = smul.addr %s19, 128
          %s228 = scalar_lea.hbm %s0, %s227
          %s230 = sshll.u32 %s223, 4
          %s231 = int_to_ptr.vmem [resolvable:$true] %s230
          %233 = dma.hbm_to_vmem [thread:$0]  %s228, 128, %s231, %s220
        $region36: #{tpu_custom_call.1} parent=31 // pred_fallthru
          _
      $region32: #{tpu_custom_call.1} parent=5 // pred_fallthru
        _
      %p234 = scmp.le.s32.totalorder 1, %s19
      %p235 = scmp.lt.s32.totalorder %s19, 3
      %p236 = pnand %p234, %p235
      %p237 = pneg %p236
      // Predicated region
      $region37: #{tpu_custom_call.1} parent=5 // pred_check
        _
      $region38: #{tpu_custom_call.1} parent=5 // pred_check_branch
        %239 = sbr.rel (%p236) target = $region40
      $region39: #{tpu_custom_call.1} parent=5 // pred_region
        %s240 = ssub.s32 %s19, 1
        %s241 = sand.u32 %s32, 1
        %s242 = scalar_lea.sflag [#allocation3], %s241
        %s243 = sand.u32 %s32, 1
        %s244 = smul.addr %s243, 8
        %s245 = scalar_lea.vmem [#allocation2], %s244
        // Predicated region
        $region41: #{tpu_custom_call.1} parent=39 // pred_check
          %p246 = pneg %p45
        $region42: #{tpu_custom_call.1} parent=39 // pred_check_branch
          %248 = sbr.rel (%p246) target = $region44
        $region43: #{tpu_custom_call.1} parent=39 // pred_region
          %249 = dma.done %s242, 128
        $region44: #{tpu_custom_call.1} parent=39 // pred_fallthru
          _
        // Predicated region
        $region45: #{tpu_custom_call.1} parent=39 // pred_check
          %p250 = pneg %p66
        $region46: #{tpu_custom_call.1} parent=39 // pred_check_branch
          %252 = sbr.rel (%p250) target = $region48
        $region47: #{tpu_custom_call.1} parent=39 // pred_region
          %253 = dma.done [#allocation6], 512
        $region48: #{tpu_custom_call.1} parent=39 // pred_fallthru
          _
        // Predicated region
        $region49: #{tpu_custom_call.1} parent=39 // pred_check
          %p254 = pneg %p87
        $region50: #{tpu_custom_call.1} parent=39 // pred_check_branch
          %256 = sbr.rel (%p254) target = $region52
        $region51: #{tpu_custom_call.1} parent=39 // pred_region
          %257 = dma.done [#allocation6], 512
        $region52: #{tpu_custom_call.1} parent=39 // pred_fallthru
          _
        // Predicated region
        $region53: #{tpu_custom_call.1} parent=39 // pred_check
          %p258 = pneg %p129
        $region54: #{tpu_custom_call.1} parent=39 // pred_check_branch
          %260 = sbr.rel (%p258) target = $region56
        $region55: #{tpu_custom_call.1} parent=39 // pred_region
          %261 = dma.done [#allocation9], 2048
        $region56: #{tpu_custom_call.1} parent=39 // pred_fallthru
          _
        %s262 = sand.u32 %s32, 1
        %s263 = scalar_lea.sflag [#allocation3], %s262
        %s264 = sand.u32 %s32, 1
        %s265 = smul.addr %s264, 8
        %s266 = scalar_lea.vmem [#allocation2], %s265
        %p267 = pneg %p45
        %p268 = pneg %p42
        %p269 = pneg %p66
        %p270 = pneg %p63
        %p271 = pneg %p87
        %p272 = pneg %p84
        %p273 = pneg %p108
        %p274 = pneg %p105
        %p275 = pneg %p129
        %p276 = pneg %p126
        %p277 = pneg %p155
        %p278 = pneg %p152
        %s279 = sand.u32 %s142, 1
        %s280 = scalar_lea.sflag [#allocation4], %s279
        %s281 = sand.u32 %s142, 1
        %s282 = smul.addr %s281, 8
        %s283 = scalar_lea.vmem [#allocation10], %s282
        %v284 = vld [vmem:[%s245] sm:$0xff]
        %v285 = vld [vmem:[%s3] sm:$0x1]
        %v286 = vld [vmem:[%s3 + $0x1] sm:$0x1]
        %v287 = vlaneseq
        %v288 = vshrl.u32 %v287, 7
        %v289 = vsub.s32 0, %v288
        %v290 = vrot.slane %v286, %v289
        %v291 = vmul.f32 %v284, %v290
        %v292 = vlaneseq
        %v293 = vshrl.u32 %v292, 7
        %v294 = vsub.s32 0, %v293
        %v295 = vrot.slane %v285, %v294
        %v296 = vsub.f32 %v295, %v291
        %v297 = vld [vmem:[#allocation5] sm:$0x1]
        %v298 = vld [vmem:[#allocation7] sm:$0x1]
        %v299 = vlaneseq
        %v300 = vshrl.u32 %v299, 7
        %v301 = vsub.s32 0, %v300
        %v302 = vrot.slane %v297, %v301
        %v303 = vsub.f32 %v284, %v302
        %v304 = vand.u32 2147483647, %v303
        %v305 = vlaneseq
        %v306 = vshrl.u32 %v305, 7
        %v307 = vsub.s32 0, %v306
        %v308 = vrot.slane %v298, %v307
        %v309 = vmul.f32 %v308, %v304
        %v310 = vadd.f32 %v296, %v309
        %v311 = vld [vmem:[#allocation5 + $0x1] sm:$0x1]
        %v312 = vld [vmem:[#allocation7 + $0x1] sm:$0x1]
        %v313 = vlaneseq
        %v314 = vshrl.u32 %v313, 7
        %v315 = vsub.s32 0, %v314
        %v316 = vrot.slane %v311, %v315
        %v317 = vsub.f32 %v284, %v316
        %v318 = vand.u32 2147483647, %v317
        %v319 = vlaneseq
        %v320 = vshrl.u32 %v319, 7
        %v321 = vsub.s32 0, %v320
        %v322 = vrot.slane %v312, %v321
        %v323 = vmul.f32 %v322, %v318
        %v324 = vadd.f32 %v310, %v323
        %v325 = vld [vmem:[#allocation5 + $0x2] sm:$0x1]
        %v326 = vld [vmem:[#allocation7 + $0x2] sm:$0x1]
        %v327 = vlaneseq
        %v328 = vshrl.u32 %v327, 7
        %v329 = vsub.s32 0, %v328
        %v330 = vrot.slane %v325, %v329
        %v331 = vsub.f32 %v284, %v330
        %v332 = vand.u32 2147483647, %v331
        %v333 = vlaneseq
        %v334 = vshrl.u32 %v333, 7
        %v335 = vsub.s32 0, %v334
        %v336 = vrot.slane %v326, %v335
        %v337 = vmul.f32 %v336, %v332
        %v338 = vadd.f32 %v324, %v337
        %v339 = vld [vmem:[#allocation5 + $0x3] sm:$0x1]
        %v340 = vld [vmem:[#allocation7 + $0x3] sm:$0x1]
        %v341 = vlaneseq
        %v342 = vshrl.u32 %v341, 7
        %v343 = vsub.s32 0, %v342
        %v344 = vrot.slane %v339, %v343
        %v345 = vsub.f32 %v284, %v344
        %v346 = vand.u32 2147483647, %v345
        %v347 = vlaneseq
        %v348 = vshrl.u32 %v347, 7
        %v349 = vsub.s32 0, %v348
        %v350 = vrot.slane %v340, %v349
        %v351 = vmul.f32 %v350, %v346
        %v352 = vadd.f32 %v338, %v351
        %v353 = vld [vmem:[#allocation5 + $0x4] sm:$0x1]
        %v354 = vld [vmem:[#allocation7 + $0x4] sm:$0x1]
        %v355 = vlaneseq
        %v356 = vshrl.u32 %v355, 7
        %v357 = vsub.s32 0, %v356
        %v358 = vrot.slane %v353, %v357
        %v359 = vsub.f32 %v284, %v358
        %v360 = vand.u32 2147483647, %v359
        %v361 = vlaneseq
        %v362 = vshrl.u32 %v361, 7
        %v363 = vsub.s32 0, %v362
        %v364 = vrot.slane %v354, %v363
        %v365 = vmul.f32 %v364, %v360
        %v366 = vadd.f32 %v352, %v365
        %v367 = vld [vmem:[#allocation5 + $0x5] sm:$0x1]
        %v368 = vld [vmem:[#allocation7 + $0x5] sm:$0x1]
        %v369 = vlaneseq
        %v370 = vshrl.u32 %v369, 7
        %v371 = vsub.s32 0, %v370
        %v372 = vrot.slane %v367, %v371
        %v373 = vsub.f32 %v284, %v372
        %v374 = vand.u32 2147483647, %v373
        %v375 = vlaneseq
        %v376 = vshrl.u32 %v375, 7
        %v377 = vsub.s32 0, %v376
        %v378 = vrot.slane %v368, %v377
        %v379 = vmul.f32 %v378, %v374
        %v380 = vadd.f32 %v366, %v379
        %v381 = vld [vmem:[#allocation5 + $0x6] sm:$0x1]
        %v382 = vld [vmem:[#allocation7 + $0x6] sm:$0x1]
        %v383 = vlaneseq
        %v384 = vshrl.u32 %v383, 7
        %v385 = vsub.s32 0, %v384
        %v386 = vrot.slane %v381, %v385
        %v387 = vsub.f32 %v284, %v386
        %v388 = vand.u32 2147483647, %v387
        %v389 = vlaneseq
        %v390 = vshrl.u32 %v389, 7
        %v391 = vsub.s32 0, %v390
        %v392 = vrot.slane %v382, %v391
        %v393 = vmul.f32 %v392, %v388
        %v394 = vadd.f32 %v380, %v393
        %v395 = vld [vmem:[#allocation5 + $0x7] sm:$0x1]
        %v396 = vld [vmem:[#allocation7 + $0x7] sm:$0x1]
        %v397 = vlaneseq
        %v398 = vshrl.u32 %v397, 7
        %v399 = vsub.s32 0, %v398
        %v400 = vrot.slane %v395, %v399
        %v401 = vsub.f32 %v284, %v400
        %v402 = vand.u32 2147483647, %v401
        %v403 = vlaneseq
        %v404 = vshrl.u32 %v403, 7
        %v405 = vsub.s32 0, %v404
        %v406 = vrot.slane %v396, %v405
        %v407 = vmul.f32 %v406, %v402
        %v408 = vadd.f32 %v394, %v407
        %v409 = vld [vmem:[#allocation5 + $0x8] sm:$0x1]
        %v410 = vld [vmem:[#allocation7 + $0x8] sm:$0x1]
        %v411 = vlaneseq
        %v412 = vshrl.u32 %v411, 7
        %v413 = vsub.s32 0, %v412
        %v414 = vrot.slane %v409, %v413
        %v415 = vsub.f32 %v284, %v414
        %v416 = vand.u32 2147483647, %v415
        %v417 = vlaneseq
        %v418 = vshrl.u32 %v417, 7
        %v419 = vsub.s32 0, %v418
        %v420 = vrot.slane %v410, %v419
        %v421 = vmul.f32 %v420, %v416
        %v422 = vadd.f32 %v408, %v421
        %v423 = vld [vmem:[#allocation5 + $0x9] sm:$0x1]
        %v424 = vld [vmem:[#allocation7 + $0x9] sm:$0x1]
        %v425 = vlaneseq
        %v426 = vshrl.u32 %v425, 7
        %v427 = vsub.s32 0, %v426
        %v428 = vrot.slane %v423, %v427
        %v429 = vsub.f32 %v284, %v428
        %v430 = vand.u32 2147483647, %v429
        %v431 = vlaneseq
        %v432 = vshrl.u32 %v431, 7
        %v433 = vsub.s32 0, %v432
        %v434 = vrot.slane %v424, %v433
        %v435 = vmul.f32 %v434, %v430
        %v436 = vadd.f32 %v422, %v435
        %v437 = vld [vmem:[#allocation5 + $0xa] sm:$0x1]
        %v438 = vld [vmem:[#allocation7 + $0xa] sm:$0x1]
        %v439 = vlaneseq
        %v440 = vshrl.u32 %v439, 7
        %v441 = vsub.s32 0, %v440
        %v442 = vrot.slane %v437, %v441
        %v443 = vsub.f32 %v284, %v442
        %v444 = vand.u32 2147483647, %v443
        %v445 = vlaneseq
        %v446 = vshrl.u32 %v445, 7
        %v447 = vsub.s32 0, %v446
        %v448 = vrot.slane %v438, %v447
        %v449 = vmul.f32 %v448, %v444
        %v450 = vadd.f32 %v436, %v449
        %v451 = vld [vmem:[#allocation5 + $0xb] sm:$0x1]
        %v452 = vld [vmem:[#allocation7 + $0xb] sm:$0x1]
        %v453 = vlaneseq
        %v454 = vshrl.u32 %v453, 7
        %v455 = vsub.s32 0, %v454
        %v456 = vrot.slane %v451, %v455
        %v457 = vsub.f32 %v284, %v456
        %v458 = vand.u32 2147483647, %v457
        %v459 = vlaneseq
        %v460 = vshrl.u32 %v459, 7
        %v461 = vsub.s32 0, %v460
        %v462 = vrot.slane %v452, %v461
        %v463 = vmul.f32 %v462, %v458
        %v464 = vadd.f32 %v450, %v463
        %v465 = vld [vmem:[#allocation5 + $0xc] sm:$0x1]
        %v466 = vld [vmem:[#allocation7 + $0xc] sm:$0x1]
        %v467 = vlaneseq
        %v468 = vshrl.u32 %v467, 7
        %v469 = vsub.s32 0, %v468
        %v470 = vrot.slane %v465, %v469
        %v471 = vsub.f32 %v284, %v470
        %v472 = vand.u32 2147483647, %v471
        %v473 = vlaneseq
        %v474 = vshrl.u32 %v473, 7
        %v475 = vsub.s32 0, %v474
        %v476 = vrot.slane %v466, %v475
        %v477 = vmul.f32 %v476, %v472
        %v478 = vadd.f32 %v464, %v477
        %v479 = vld [vmem:[#allocation5 + $0xd] sm:$0x1]
        %v480 = vld [vmem:[#allocation7 + $0xd] sm:$0x1]
        %v481 = vlaneseq
        %v482 = vshrl.u32 %v481, 7
        %v483 = vsub.s32 0, %v482
        %v484 = vrot.slane %v479, %v483
        %v485 = vsub.f32 %v284, %v484
        %v486 = vand.u32 2147483647, %v485
        %v487 = vlaneseq
        %v488 = vshrl.u32 %v487, 7
        %v489 = vsub.s32 0, %v488
        %v490 = vrot.slane %v480, %v489
        %v491 = vmul.f32 %v490, %v486
        %v492 = vadd.f32 %v478, %v491
        %v493 = vld [vmem:[#allocation5 + $0xe] sm:$0x1]
        %v494 = vld [vmem:[#allocation7 + $0xe] sm:$0x1]
        %v495 = vlaneseq
        %v496 = vshrl.u32 %v495, 7
        %v497 = vsub.s32 0, %v496
        %v498 = vrot.slane %v493, %v497
        %v499 = vsub.f32 %v284, %v498
        %v500 = vand.u32 2147483647, %v499
        %v501 = vlaneseq
        %v502 = vshrl.u32 %v501, 7
        %v503 = vsub.s32 0, %v502
        %v504 = vrot.slane %v494, %v503
        %v505 = vmul.f32 %v504, %v500
        %v506 = vadd.f32 %v492, %v505
        %v507 = vld [vmem:[#allocation5 + $0xf] sm:$0x1]
        %v508 = vld [vmem:[#allocation7 + $0xf] sm:$0x1]
        %v509 = vlaneseq
        %v510 = vshrl.u32 %v509, 7
        %v511 = vsub.s32 0, %v510
        %v512 = vrot.slane %v507, %v511
        %v513 = vsub.f32 %v284, %v512
        %v514 = vand.u32 2147483647, %v513
        %v515 = vlaneseq
        %v516 = vshrl.u32 %v515, 7
        %v517 = vsub.s32 0, %v516
        %v518 = vrot.slane %v508, %v517
        %v519 = vmul.f32 %v518, %v514
        %v520 = vadd.f32 %v506, %v519
        %v521 = vld [vmem:[#allocation5 + $0x10] sm:$0x1]
        %v522 = vld [vmem:[#allocation7 + $0x10] sm:$0x1]
        %v523 = vlaneseq
        %v524 = vshrl.u32 %v523, 7
        %v525 = vsub.s32 0, %v524
        %v526 = vrot.slane %v521, %v525
        %v527 = vsub.f32 %v284, %v526
        %v528 = vand.u32 2147483647, %v527
        %v529 = vlaneseq
        %v530 = vshrl.u32 %v529, 7
        %v531 = vsub.s32 0, %v530
        %v532 = vrot.slane %v522, %v531
        %v533 = vmul.f32 %v532, %v528
        %v534 = vadd.f32 %v520, %v533
        %v535 = vld [vmem:[#allocation5 + $0x11] sm:$0x1]
        %v536 = vld [vmem:[#allocation7 + $0x11] sm:$0x1]
        %v537 = vlaneseq
        %v538 = vshrl.u32 %v537, 7
        %v539 = vsub.s32 0, %v538
        %v540 = vrot.slane %v535, %v539
        %v541 = vsub.f32 %v284, %v540
        %v542 = vand.u32 2147483647, %v541
        %v543 = vlaneseq
        %v544 = vshrl.u32 %v543, 7
        %v545 = vsub.s32 0, %v544
        %v546 = vrot.slane %v536, %v545
        %v547 = vmul.f32 %v546, %v542
        %v548 = vadd.f32 %v534, %v547
        %v549 = vld [vmem:[#allocation5 + $0x12] sm:$0x1]
        %v550 = vld [vmem:[#allocation7 + $0x12] sm:$0x1]
        %v551 = vlaneseq
        %v552 = vshrl.u32 %v551, 7
        %v553 = vsub.s32 0, %v552
        %v554 = vrot.slane %v549, %v553
        %v555 = vsub.f32 %v284, %v554
        %v556 = vand.u32 2147483647, %v555
        %v557 = vlaneseq
        %v558 = vshrl.u32 %v557, 7
        %v559 = vsub.s32 0, %v558
        %v560 = vrot.slane %v550, %v559
        %v561 = vmul.f32 %v560, %v556
        %v562 = vadd.f32 %v548, %v561
        %v563 = vld [vmem:[#allocation5 + $0x13] sm:$0x1]
        %v564 = vld [vmem:[#allocation7 + $0x13] sm:$0x1]
        %v565 = vlaneseq
        %v566 = vshrl.u32 %v565, 7
        %v567 = vsub.s32 0, %v566
        %v568 = vrot.slane %v563, %v567
        %v569 = vsub.f32 %v284, %v568
        %v570 = vand.u32 2147483647, %v569
        %v571 = vlaneseq
        %v572 = vshrl.u32 %v571, 7
        %v573 = vsub.s32 0, %v572
        %v574 = vrot.slane %v564, %v573
        %v575 = vmul.f32 %v574, %v570
        %v576 = vadd.f32 %v562, %v575
        %v577 = vld [vmem:[#allocation5 + $0x14] sm:$0x1]
        %v578 = vld [vmem:[#allocation7 + $0x14] sm:$0x1]
        %v579 = vlaneseq
        %v580 = vshrl.u32 %v579, 7
        %v581 = vsub.s32 0, %v580
        %v582 = vrot.slane %v577, %v581
        %v583 = vsub.f32 %v284, %v582
        %v584 = vand.u32 2147483647, %v583
        %v585 = vlaneseq
        %v586 = vshrl.u32 %v585, 7
        %v587 = vsub.s32 0, %v586
        %v588 = vrot.slane %v578, %v587
        %v589 = vmul.f32 %v588, %v584
        %v590 = vadd.f32 %v576, %v589
        %v591 = vld [vmem:[#allocation5 + $0x15] sm:$0x1]
        %v592 = vld [vmem:[#allocation7 + $0x15] sm:$0x1]
        %v593 = vlaneseq
        %v594 = vshrl.u32 %v593, 7
        %v595 = vsub.s32 0, %v594
        %v596 = vrot.slane %v591, %v595
        %v597 = vsub.f32 %v284, %v596
        %v598 = vand.u32 2147483647, %v597
        %v599 = vlaneseq
        %v600 = vshrl.u32 %v599, 7
        %v601 = vsub.s32 0, %v600
        %v602 = vrot.slane %v592, %v601
        %v603 = vmul.f32 %v602, %v598
        %v604 = vadd.f32 %v590, %v603
        %v605 = vld [vmem:[#allocation5 + $0x16] sm:$0x1]
        %v606 = vld [vmem:[#allocation7 + $0x16] sm:$0x1]
        %v607 = vlaneseq
        %v608 = vshrl.u32 %v607, 7
        %v609 = vsub.s32 0, %v608
        %v610 = vrot.slane %v605, %v609
        %v611 = vsub.f32 %v284, %v610
        %v612 = vand.u32 2147483647, %v611
        %v613 = vlaneseq
        %v614 = vshrl.u32 %v613, 7
        %v615 = vsub.s32 0, %v614
        %v616 = vrot.slane %v606, %v615
        %v617 = vmul.f32 %v616, %v612
        %v618 = vadd.f32 %v604, %v617
        %v619 = vld [vmem:[#allocation5 + $0x17] sm:$0x1]
        %v620 = vld [vmem:[#allocation7 + $0x17] sm:$0x1]
        %v621 = vlaneseq
        %v622 = vshrl.u32 %v621, 7
        %v623 = vsub.s32 0, %v622
        %v624 = vrot.slane %v619, %v623
        %v625 = vsub.f32 %v284, %v624
        %v626 = vand.u32 2147483647, %v625
        %v627 = vlaneseq
        %v628 = vshrl.u32 %v627, 7
        %v629 = vsub.s32 0, %v628
        %v630 = vrot.slane %v620, %v629
        %v631 = vmul.f32 %v630, %v626
        %v632 = vadd.f32 %v618, %v631
        %v633 = vld [vmem:[#allocation5 + $0x18] sm:$0x1]
        %v634 = vld [vmem:[#allocation7 + $0x18] sm:$0x1]
        %v635 = vlaneseq
        %v636 = vshrl.u32 %v635, 7
        %v637 = vsub.s32 0, %v636
        %v638 = vrot.slane %v633, %v637
        %v639 = vsub.f32 %v284, %v638
        %v640 = vand.u32 2147483647, %v639
        %v641 = vlaneseq
        %v642 = vshrl.u32 %v641, 7
        %v643 = vsub.s32 0, %v642
        %v644 = vrot.slane %v634, %v643
        %v645 = vmul.f32 %v644, %v640
        %v646 = vadd.f32 %v632, %v645
        %v647 = vld [vmem:[#allocation8] sm:$0xff]
        %v648 = vld [vmem:[#allocation8 + $0x8] sm:$0xff]
        %v649 = vld [vmem:[#allocation8 + $0x10] sm:$0xff]
        %v650 = vld [vmem:[#allocation8 + $0x18] sm:$0xff]
        %v651 = vld [vmem:[#allocation8 + $0x20] sm:$0xff]
        %v652 = vld [vmem:[#allocation8 + $0x28] sm:$0xff]
        %v653 = vld [vmem:[#allocation8 + $0x30] sm:$0xff]
        %v654 = vld [vmem:[#allocation8 + $0x38] sm:$0xff]
        %v655 = vld [vmem:[#allocation8 + $0x40] sm:$0xff]
        %v656 = vld [vmem:[#allocation8 + $0x48] sm:$0xff]
        %v657 = vld [vmem:[#allocation8 + $0x50] sm:$0xff]
        %v658 = vld [vmem:[#allocation8 + $0x58] sm:$0xff]
        %v659 = vld [vmem:[#allocation8 + $0x60] sm:$0xff]
        %v660 = vld [vmem:[#allocation8 + $0x68] sm:$0xff]
        %v661 = vld [vmem:[#allocation8 + $0x70] sm:$0xff]
        %v662 = vld [vmem:[#allocation8 + $0x78] sm:$0xff]
        %663 = vmatprep.subr.mxu0 0.0
        %664 = vmatpush1.msra.mxu0 %v662
        %665 = vmatprep.subr.mxu0 0.0
        %666 = vmatpush1.msra.mxu0 %v661
        %667 = vmatprep.subr.mxu0 0.0
        %668 = vmatpush1.msra.mxu0 %v660
        %669 = vmatprep.subr.mxu0 0.0
        %670 = vmatpush1.msra.mxu0 %v659
        %671 = vmatprep.subr.mxu0 0.0
        %672 = vmatpush1.msra.mxu0 %v658
        %673 = vmatprep.subr.mxu0 0.0
        %674 = vmatpush1.msra.mxu0 %v657
        %675 = vmatprep.subr.mxu0 0.0
        %676 = vmatpush1.msra.mxu0 %v656
        %677 = vmatprep.subr.mxu0 0.0
        %678 = vmatpush1.msra.mxu0 %v655
        %679 = vmatprep.subr.mxu0 0.0
        %680 = vmatpush1.msra.mxu0 %v654
        %681 = vmatprep.subr.mxu0 0.0
        %682 = vmatpush1.msra.mxu0 %v653
        %683 = vmatprep.subr.mxu0 0.0
        %684 = vmatpush1.msra.mxu0 %v652
        %685 = vmatprep.subr.mxu0 0.0
        %686 = vmatpush1.msra.mxu0 %v651
        %687 = vmatprep.subr.mxu0 0.0
        %688 = vmatpush1.msra.mxu0 %v650
        %689 = vmatprep.subr.mxu0 0.0
        %690 = vmatpush1.msra.mxu0 %v649
        %691 = vmatprep.subr.mxu0 0.0
        %692 = vmatpush1.msra.mxu0 %v648
        %693 = vmatprep.subr.mxu0 0.0
        %694 = vmatpush1.msra.mxu0 %v647
        %695 = vmatprep.subr.mxu0 0.0
        %696 = vmatpush2.msra.mxu0 0.0
        %697 = vmatprep.subr.mxu0 0.0
        %698 = vmatpush2.msra.mxu0 0.0
        %699 = vmatprep.subr.mxu0 0.0
        %700 = vmatpush2.msra.mxu0 0.0
        %701 = vmatprep.subr.mxu0 0.0
        %702 = vmatpush2.msra.mxu0 0.0
        %703 = vmatprep.subr.mxu0 0.0
        %704 = vmatpush2.msra.mxu0 0.0
        %705 = vmatprep.subr.mxu0 0.0
        %706 = vmatpush2.msra.mxu0 0.0
        %707 = vmatprep.subr.mxu0 0.0
        %708 = vmatpush2.msra.mxu0 0.0
        %709 = vmatprep.subr.mxu0 0.0
        %710 = vmatpush2.msra.mxu0 0.0
        %711 = vmatprep.subr.mxu0 0.0
        %712 = vmatpush2.msra.mxu0 0.0
        %713 = vmatprep.subr.mxu0 0.0
        %714 = vmatpush2.msra.mxu0 0.0
        %715 = vmatprep.subr.mxu0 0.0
        %716 = vmatpush2.msra.mxu0 0.0
        %717 = vmatprep.subr.mxu0 0.0
        %718 = vmatpush2.msra.mxu0 0.0
        %719 = vmatprep.subr.mxu0 0.0
        %720 = vmatpush2.msra.mxu0 0.0
        %721 = vmatprep.subr.mxu0 0.0
        %722 = vmatpush2.msra.mxu0 0.0
        %723 = vmatprep.subr.mxu0 0.0
        %724 = vmatpush2.msra.mxu0 0.0
        %725 = vmatprep.subr.mxu0 0.0
        %726 = vmatpush2.msra.mxu0 0.0
        %727 = vmatprep.mubr.f32.mxu0 0.0
        %728 = vmatmul.mubr.f32.gmra.mxu0 %v646
        %v729 = vpop.f32.mrf.mxu0
        %v730 = vadd.f32 0.0, %v729
        %v731 = vpop.f32.mrf.mxu0
        %732 = vdwg.mxu0
        %733 = vst [vmem:[%s283] sm:$0xff] %v730
        %s734 = sand.u32 %s142, 1
        %s735 = scalar_lea.sflag [#allocation4], %s734
        %s736 = sand.u32 %s142, 1
        %s737 = smul.addr %s736, 8
        %s738 = scalar_lea.vmem [#allocation10], %s737
        // Predicated region
        $region57: #{tpu_custom_call.1} parent=39 // pred_check
          %p739 = pneg %p152
        $region58: #{tpu_custom_call.1} parent=39 // pred_check_branch
          %741 = sbr.rel (%p739) target = $region60
        $region59: #{tpu_custom_call.1} parent=39 // pred_region
          %s743 = ssub.s32 128, 128
          %744 = vsyncadd %s735, %s743
          %s745 = smul.addr %s24, 128
          %s746 = scalar_lea.hbm %s5, %s745
          %s748 = sshll.u32 %s738, 4
          %s749 = int_to_ptr.vmem [resolvable:$true] %s748
          %751 = dma.vmem_to_hbm [thread:$0]  %s749, 128, %s746, %s735
        $region60: #{tpu_custom_call.1} parent=39 // pred_fallthru
          _
      $region40: #{tpu_custom_call.1} parent=5 // pred_fallthru
        _
      %p752 = scmp.le.s32.totalorder 2, %s19
      // Predicated region
      $region61: #{tpu_custom_call.1} parent=5 // pred_check
        %p753 = pneg %p752
      $region62: #{tpu_custom_call.1} parent=5 // pred_check_branch
        %755 = sbr.rel (%p753) target = $region64
      $region63: #{tpu_custom_call.1} parent=5 // pred_region
        %s756 = ssub.s32 %s19, 2
        // Predicated region
        $region65: #{tpu_custom_call.1} parent=63 // pred_check
          %p757 = pneg %p158
        $region66: #{tpu_custom_call.1} parent=63 // pred_check_branch
          %759 = sbr.rel (%p757) target = $region68
        $region67: #{tpu_custom_call.1} parent=63 // pred_region
          %s760 = sand.u32 %s143, 1
          %s761 = scalar_lea.sflag [#allocation4], %s760
          %s762 = sand.u32 %s143, 1
          %s763 = smul.addr %s762, 8
          %s764 = scalar_lea.vmem [#allocation10], %s763
          %765 = dma.done %s761, 128
        $region68: #{tpu_custom_call.1} parent=63 // pred_fallthru
          _
      $region64: #{tpu_custom_call.1} parent=5 // pred_fallthru
        _
    $region6: #{tpu_custom_call.1} parent=1 // loop_footer
      %s23 = sadd.s32 1, %s19
    $region7: #{tpu_custom_call.1} parent=1 // loop_footer_branch
      %18 = sbr.rel target = $region3
    $region8: #{tpu_custom_call.1} parent=1 // loop_exit
      _
    %766 = vsyncpa [#allocation3], 1
    %s767 = scalar_lea.sflag [#allocation3], 1
    %768 = vsyncpa %s767, 1
    %769 = vsyncpa [#allocation6], 1
    %770 = vsyncpa [#allocation9], 1
    %771 = vsyncpa [#allocation4], 1
    %s772 = scalar_lea.sflag [#allocation4], 1
    %773 = vsyncpa %s772, 1

</llo_original>
